<compile_context>
chip_gen: v7x
topology: tpu7x:2x2x1
jax: 0.10.0
libtpu: 0.0.40
codegen_flags: <defaults>
</compile_context>

<pallas_src>
import jax
import jax.numpy as jnp
from jax.experimental import pallas as pl
from jax.experimental.pallas import tpu as pltpu


def _cdiv(a, b):
    return -(-a // b)


def _round_up(x, m):
    return _cdiv(x, m) * m


def _p8(n):
    return _round_up(n, 8)


def _p128(n):
    return _round_up(n, 128)


def _vmem_capacity_bytes():
    # Per-generation physical VMEM (v5e/v6e: 128 MiB, v7x: 64 MiB per TC).
    try:
        return int(pltpu.get_tpu_info().vmem_capacity_bytes)
    except Exception:
        return 64 << 20  # conservative fallback (v7x)


def _pick_batch_tile(B, *, granule=128, max_tile=1024):
    """Batch tile: sublane/MXU aligned, <= max_tile, preferring >= 2 grid
    steps (so both v7x TensorCores get work) and minimal padding waste."""
    if B <= granule:
        return B  # one full-extent block (legal even if B % 8 != 0)
    best_tb, best_key = None, None
    for tb in range(granule, max_tile + 1, granule):
        n = _cdiv(B, tb)
        waste = n * tb - B
        key = (0 if n >= 2 else 1, waste, -tb)
        if best_key is None or key < best_key:
            best_tb, best_key = tb, key
    return best_tb


def _pick_hidden_chunk(in_f, hidden, out_f, tb, w_itemsize, capacity):
    """Chunk the hidden axis only when the streamed weight chunks plus the f32
    fc1 activation chunk would not fit comfortably in VMEM (v7x: 64 MiB)."""
    if hidden % 128 != 0:
        return hidden  # non-lane-aligned hidden: keep the full-extent block
    budget = int(capacity * 0.55)

    def streamed_bytes(th):
        return (2 * (_p8(in_f) * th + th * _p128(out_f)) * w_itemsize
                + _p8(tb) * th * 4)

    th = hidden
    while th > 128 and streamed_bytes(th) > budget:
        cand = th // 2
        if cand % 128 != 0 or hidden % cand != 0:
            break
        th = cand
    return th


def _perceptron_kernel(x_ref, w1_ref, b1_ref, w2_ref, b2_ref, o_ref, acc_ref):
    h_idx = pl.program_id(1)

    @pl.when(h_idx == 0)
    def _init():
        acc_ref[...] = jnp.zeros_like(acc_ref)

    # fc1 chunk: [TB, in] @ [in, TH] with f32 MXU accumulation.
    h = jnp.dot(x_ref[...], w1_ref[...], preferred_element_type=jnp.float32)
    # bias + relu in f32 on the VPU (also avoids bf16 VPU paths on v5e).
    h = jnp.maximum(h + b1_ref[...], 0.0)
    # fc2 chunk contribution: [TB, TH] @ [TH, out], accumulated in f32 VMEM.
    # NOTE: h is cast to the weight dtype before the second MXU op; with bf16
    # weights this adds one bf16 rounding of the activations vs an f32 ref.
    acc_ref[...] += jnp.dot(h.astype(w2_ref.dtype), w2_ref[...],
                            preferred_element_type=jnp.float32)

    @pl.when(h_idx == pl.num_programs(1) - 1)
    def _finalize():
        o_ref[...] = (acc_ref[...] + b2_ref[...]).astype(o_ref.dtype)


def prepare_params(w1, b1, w2, b2, *, dtype=None):
    """One-time parameter prep (call once, outside the forward hot path).

    Weights are stored transposed vs PyTorch ([in, out]) so the kernel computes
    plain x @ w + b; biases become [1, F].  Optionally cast to bf16 here once
    (halves HBM traffic / VMEM residency; the kernel keeps f32 accumulation).
    """
    if dtype is not None:
        w1, w2 = w1.astype(dtype), w2.astype(dtype)
        b1, b2 = b1.astype(dtype), b2.astype(dtype)
    return w1, b1.reshape(1, -1), w2, b2.reshape(1, -1)


def perceptron_forward(x, w1, b1, w2, b2, *, batch_tile=None, hidden_chunk=None):
    """x: [..., in]; w1: [in, hidden]; b1: [hidden] or [1, hidden];
    w2: [hidden, out]; b2: [out] or [1, out]  ->  [..., out]."""
    in_f, hidden = w1.shape
    hidden_w, out_f = w2.shape
    assert hidden_w == hidden and x.shape[-1] == in_f
    b1 = b1.reshape(1, hidden)
    b2 = b2.reshape(1, out_f)

    lead = x.shape[:-1]
    x2 = x.reshape(-1, in_f)
    B = x2.shape[0]

    capacity = _vmem_capacity_bytes()
    x_isz = jnp.dtype(x.dtype).itemsize
    w_isz = jnp.dtype(w1.dtype).itemsize
    b_isz = jnp.dtype(b1.dtype).itemsize

    # Batch tiling: no HBM-side padding; the last grid block may be partial
    # (out-of-bounds reads are garbage rows whose outputs are discarded).
    if batch_tile is None:
        tb = _pick_batch_tile(B)
    else:
        tb = min(batch_tile, B)
        if tb != B:
            tb = max(8, (tb // 8) * 8)
    n_b = _cdiv(B, tb)

    # Hidden streaming only when the weights would not comfortably fit VMEM.
    if hidden_chunk is None:
        th = _pick_hidden_chunk(in_f, hidden, out_f, tb, w_isz, capacity)
    else:
        th = hidden_chunk
        assert th == hidden or (hidden % th == 0 and th % 128 == 0)
    n_h = hidden // th

    grid = (n_b, n_h)

    # Weights/biases have constant index maps when n_h == 1; single-buffer
    # them there so default double-buffering doesn't double a large residency.
    resident_w = 2 * (_p8(in_f) * _p128(th) + _p8(th) * _p128(out_f)) * w_isz
    single_buffer_weights = (n_h == 1) and (resident_w > (8 << 20))
    w_mode = pl.Buffered(1) if single_buffer_weights else None
    w_bufs = 1 if single_buffer_weights else 2

    # Honest VMEM budget (lane/sublane-padded, counts double buffering).
    vmem_needed = (
        2 * _p8(tb) * _p128(in_f) * x_isz                       # x tiles
        + 2 * _p8(tb) * _p128(out_f) * x_isz                    # out tiles
        + w_bufs * (_p8(in_f) * _p128(th)
                    + _p8(th) * _p128(out_f)) * w_isz           # w1 / w2
        + w_bufs * (_p128(th) + _p128(out_f)) * 8 * b_isz       # biases
        + _p8(tb) * _p128(out_f) * 4                            # f32 acc scratch
        + _p8(tb) * _p128(th) * 4                               # fc1 chunk (h)
        + (2 << 20)                                             # internal scratch
    )
    # Always pass an explicit limit (v5e default is only 16 MiB), capped below
    # the actual device capacity (v7x is 64 MiB physical).
    vmem_limit = int(min(capacity - (8 << 20),
                         max(32 << 20, vmem_needed * 3 // 2)))

    w_bytes = (in_f * hidden + hidden * out_f) * w_isz
    cost = pl.CostEstimate(
        flops=2 * n_b * tb * (in_f * hidden + hidden * out_f),
        transcendentals=0,
        bytes_accessed=(B * in_f * x_isz
                        + (w_bytes if n_h == 1 else n_b * w_bytes)
                        + (hidden + out_f) * b_isz
                        + B * out_f * x_isz),
    )

    out = pl.pallas_call(
        _perceptron_kernel,
        out_shape=jax.ShapeDtypeStruct((B, out_f), x.dtype),
        grid=grid,
        in_specs=[
            pl.BlockSpec((tb, in_f), lambda i, h: (i, 0)),       # x tile (streamed)
            pl.BlockSpec((in_f, th), lambda i, h: (0, h),
                         pipeline_mode=w_mode),                  # w1 chunk
            pl.BlockSpec((1, th), lambda i, h: (0, h),
                         pipeline_mode=w_mode),                  # b1 chunk
            pl.BlockSpec((th, out_f), lambda i, h: (h, 0),
                         pipeline_mode=w_mode),                  # w2 chunk
            pl.BlockSpec((1, out_f), lambda i, h: (0, 0),
                         pipeline_mode=w_mode),                  # b2
        ],
        out_specs=pl.BlockSpec((tb, out_f), lambda i, h: (i, 0)),
        scratch_shapes=[pltpu.VMEM((tb, out_f), jnp.float32)],
        compiler_params=pltpu.CompilerParams(
            dimension_semantics=("parallel", "arbitrary"),
            vmem_limit_bytes=vmem_limit,
        ),
        cost_estimate=cost,
    )(x2, w1, b1, w2, b2)

    return out.reshape(*lead, out_f)


def _init_linear(key, fan_in, fan_out, dtype=jnp.float32):
    # Mimic PyTorch nn.Linear default init: U(-1/sqrt(fan_in), 1/sqrt(fan_in)).
    kw, kb = jax.random.split(key)
    bound = 1.0 / jnp.sqrt(fan_in)
    # Stored as [fan_in, fan_out] (transposed relative to PyTorch's [out, in]).
    w = jax.random.uniform(kw, (fan_in, fan_out), dtype, -bound, bound)
    b = jax.random.uniform(kb, (1, fan_out), dtype, -bound, bound)
    return w, b


def _reference(x, w1, b1, w2, b2):
    return jnp.maximum(x @ w1 + b1, 0.0) @ w2 + b2


if __name__ == "__main__":
    key = jax.random.PRNGKey(0)
    kx, k1, k2, kx2 = jax.random.split(key, 4)

    # Small shapes implied by the module.
    in_features, hidden_dim, out_features = 16, 32, 8
    batch = 4

    x = jax.random.normal(kx, (batch, in_features), jnp.float32)
    w1r, b1r = _init_linear(k1, in_features, hidden_dim)
    w2r, b2r = _init_linear(k2, hidden_dim, out_features)
    w1, b1, w2, b2 = prepare_params(w1r, b1r, w2r, b2r)   # one-time prep

    # 1) tiny batch, single-step grid, f32.
    y = perceptron_forward(x, w1, b1, w2, b2)
    jax.block_until_ready(y)
    ref = _reference(x, w1, b1, w2, b2)
    assert y.shape == (batch, out_features)
    assert jnp.allclose(y, ref, atol=1e-5, rtol=1e-5)

    # 2) multi-step batch grid with a partial last block (no HBM-side padding).
    x2 = jax.random.normal(kx2, (300, in_features), jnp.float32)
    y2 = perceptron_forward(x2, w1, b1, w2, b2)
    jax.block_until_ready(y2)
    ref2 = _reference(x2, w1, b1, w2, b2)
    assert y2.shape == (300, out_features)
    assert jnp.allclose(y2, ref2, atol=1e-5, rtol=1e-5)

    # 3) hidden-axis streaming (accumulator) path, forced at small shapes.
    k3, k4, kx3 = jax.random.split(jax.random.PRNGKey(1), 3)
    w1b_r, b1b_r = _init_linear(k3, in_features, 256)
    w2b_r, b2b_r = _init_linear(k4, 256, out_features)
    w1b, b1b, w2b, b2b = prepare_params(w1b_r, b1b_r, w2b_r, b2b_r)
    x3 = jax.random.normal(kx3, (64, in_features), jnp.float32)
    y3 = perceptron_forward(x3, w1b, b1b, w2b, b2b, hidden_chunk=128)
    jax.block_until_ready(y3)
    ref3 = _reference(x3, w1b, b1b, w2b, b2b)
    assert jnp.allclose(y3, ref3, atol=1e-4, rtol=1e-4)

    # 4) bf16 params + activations (dtype-agnostic kernel; f32 accumulation).
    w1h, b1h, w2h, b2h = prepare_params(w1r, b1r, w2r, b2r, dtype=jnp.bfloat16)
    xb = x.astype(jnp.bfloat16)
    yb = perceptron_forward(xb, w1h, b1h, w2h, b2h)
    jax.block_until_ready(yb)
    refb = _reference(xb.astype(jnp.float32), w1h.astype(jnp.float32),
                      b1h.astype(jnp.float32), w2h.astype(jnp.float32),
                      b2h.astype(jnp.float32))
    assert jnp.allclose(yb.astype(jnp.float32), refb, atol=5e-2, rtol=5e-2)

    print("KERNEL_OK")
</pallas_src>

<mosaic_0001>
module attributes {stable_mosaic.version = 11 : i64} {
  func.func @_perceptron_kernel(%arg0: i32, %arg1: i32, %arg2: memref<4x16xf32, #tpu.memory_space<vmem>>, %arg3: memref<16x32xf32, #tpu.memory_space<vmem>>, %arg4: memref<1x32xf32, #tpu.memory_space<vmem>>, %arg5: memref<32x8xf32, #tpu.memory_space<vmem>>, %arg6: memref<1x8xf32, #tpu.memory_space<vmem>>, %arg7: memref<4x8xf32, #tpu.memory_space<vmem>>, %arg8: memref<4x8xf32, #tpu.memory_space<vmem>>) attributes {dimension_semantics = [#tpu.dimension_semantics<parallel>, #tpu.dimension_semantics<arbitrary>], iteration_bounds = array<i64: 1, 1>, scalar_prefetch = 0 : i64, scratch_operands = 1 : i64, tpu.core_type = #tpu.core_type<tc>, window_params = [{transform_indices = @transform_0, window_bounds = array<i64: 4, 16>}, {transform_indices = @transform_1, window_bounds = array<i64: 16, 32>}, {transform_indices = @transform_2, window_bounds = array<i64: 1, 32>}, {transform_indices = @transform_3, window_bounds = array<i64: 32, 8>}, {pipeline_mode = #tpu.pipeline_mode<synchronous>, transform_indices = @transform_4, window_bounds = array<i64: 1, 8>}, {transform_indices = @transform_5, window_bounds = array<i64: 4, 8>}]} {
    %c0_i32 = arith.constant 0 : i32
    %0 = arith.cmpi eq, %arg1, %c0_i32 : i32
    %1 = arith.extui %0 : i1 to i32
    %c0_i32_0 = arith.constant 0 : i32
    %2 = arith.cmpi ne, %1, %c0_i32_0 : i32
    scf.if %2 {
      %cst_16 = arith.constant 0.000000e+00 : f32
      %19 = vector.broadcast %cst_16 : f32 to vector<4x8xf32>
      %c0_17 = arith.constant 0 : index
      %c0_18 = arith.constant 0 : index
      %20 = vector.load %arg8[%c0_17, %c0_18] : memref<4x8xf32, #tpu.memory_space<vmem>>, vector<4x8xf32>
      tpu.vector_store %arg8[%c0_17, %c0_18], %19 {strides = array<i32>} : memref<4x8xf32, #tpu.memory_space<vmem>>, vector<4x8xf32>,
    } else {
    }
    %c0 = arith.constant 0 : index
    %c0_1 = arith.constant 0 : index
    %3 = vector.load %arg2[%c0, %c0_1] : memref<4x16xf32, #tpu.memory_space<vmem>>, vector<4x16xf32>
    %c0_2 = arith.constant 0 : index
    %c0_3 = arith.constant 0 : index
    %4 = vector.load %arg3[%c0_2, %c0_3] : memref<16x32xf32, #tpu.memory_space<vmem>>, vector<16x32xf32>
    %cst = arith.constant dense<0.000000e+00> : vector<4x32xf32>
    %5 = tpu.matmul %3, %4, %cst {dimension_numbers = #tpu.dot_dimension_numbers<[1], [0], [0], [1], [0, 0, 1, 1], [], []>} : vector<4x16xf32>, vector<16x32xf32>, vector<4x32xf32> -> vector<4x32xf32>
    %c0_4 = arith.constant 0 : index
    %c0_5 = arith.constant 0 : index
    %6 = vector.load %arg4[%c0_4, %c0_5] : memref<1x32xf32, #tpu.memory_space<vmem>>, vector<1x32xf32>
    %7 = vector.broadcast %6 : vector<1x32xf32> to vector<4x32xf32>
    %8 = arith.addf %5, %7 : vector<4x32xf32>
    %cst_6 = arith.constant 0.000000e+00 : f32
    %9 = vector.broadcast %cst_6 : f32 to vector<4x32xf32>
    %10 = arith.maximumf %8, %9 : vector<4x32xf32>
    %c0_7 = arith.constant 0 : index
    %c0_8 = arith.constant 0 : index
    %11 = vector.load %arg8[%c0_7, %c0_8] : memref<4x8xf32, #tpu.memory_space<vmem>>, vector<4x8xf32>
    %c0_9 = arith.constant 0 : index
    %c0_10 = arith.constant 0 : index
    %12 = vector.load %arg5[%c0_9, %c0_10] : memref<32x8xf32, #tpu.memory_space<vmem>>, vector<32x8xf32>
    %cst_11 = arith.constant dense<0.000000e+00> : vector<4x8xf32>
    %13 = tpu.matmul %10, %12, %cst_11 {dimension_numbers = #tpu.dot_dimension_numbers<[1], [0], [0], [1], [0, 0, 1, 1], [], []>} : vector<4x32xf32>, vector<32x8xf32>, vector<4x8xf32> -> vector<4x8xf32>
    %14 = arith.addf %11, %13 : vector<4x8xf32>
    %c0_12 = arith.constant 0 : index
    %c0_13 = arith.constant 0 : index
    %15 = vector.load %arg8[%c0_12, %c0_13] : memref<4x8xf32, #tpu.memory_space<vmem>>, vector<4x8xf32>
    tpu.vector_store %arg8[%c0_12, %c0_13], %14 {strides = array<i32>} : memref<4x8xf32, #tpu.memory_space<vmem>>, vector<4x8xf32>,
    %c0_i32_14 = arith.constant 0 : i32
    %16 = arith.cmpi eq, %arg1, %c0_i32_14 : i32
    %17 = arith.extui %16 : i1 to i32
    %c0_i32_15 = arith.constant 0 : i32
    %18 = arith.cmpi ne, %17, %c0_i32_15 : i32
    scf.if %18 {
      %c0_16 = arith.constant 0 : index
      %c0_17 = arith.constant 0 : index
      %19 = vector.load %arg8[%c0_16, %c0_17] : memref<4x8xf32, #tpu.memory_space<vmem>>, vector<4x8xf32>
      %c0_18 = arith.constant 0 : index
      %c0_19 = arith.constant 0 : index
      %20 = vector.load %arg6[%c0_18, %c0_19] : memref<1x8xf32, #tpu.memory_space<vmem>>, vector<1x8xf32>
      %21 = vector.broadcast %20 : vector<1x8xf32> to vector<4x8xf32>
      %22 = arith.addf %19, %21 : vector<4x8xf32>
      %c0_20 = arith.constant 0 : index
      %c0_21 = arith.constant 0 : index
      %23 = vector.load %arg7[%c0_20, %c0_21] : memref<4x8xf32, #tpu.memory_space<vmem>>, vector<4x8xf32>
      tpu.vector_store %arg7[%c0_20, %c0_21], %22 {strides = array<i32>} : memref<4x8xf32, #tpu.memory_space<vmem>>, vector<4x8xf32>,
    } else {
    }
    return
  }
  func.func @transform_0(%arg0: i32, %arg1: i32) -> (i32, i32) {
    %c0_i32 = arith.constant 0 : i32
    %c0_i32_0 = arith.constant 0 : i32
    return %arg0, %c0_i32 : i32, i32
  }
  func.func @transform_1(%arg0: i32, %arg1: i32) -> (i32, i32) {
    %c0_i32 = arith.constant 0 : i32
    %c0_i32_0 = arith.constant 0 : i32
    return %c0_i32, %arg1 : i32, i32
  }
  func.func @transform_2(%arg0: i32, %arg1: i32) -> (i32, i32) {
    %c0_i32 = arith.constant 0 : i32
    %c0_i32_0 = arith.constant 0 : i32
    return %c0_i32, %arg1 : i32, i32
  }
  func.func @transform_3(%arg0: i32, %arg1: i32) -> (i32, i32) {
    %c0_i32 = arith.constant 0 : i32
    %c0_i32_0 = arith.constant 0 : i32
    return %arg1, %c0_i32 : i32, i32
  }
  func.func @transform_4(%arg0: i32, %arg1: i32) -> (i32, i32) {
    %c0_i32 = arith.constant 0 : i32
    %c0_i32_0 = arith.constant 0 : i32
    %c0_i32_1 = arith.constant 0 : i32
    return %c0_i32, %c0_i32_0 : i32, i32
  }
  func.func @transform_5(%arg0: i32, %arg1: i32) -> (i32, i32) {
    %c0_i32 = arith.constant 0 : i32
    %c0_i32_0 = arith.constant 0 : i32
    return %arg0, %c0_i32 : i32, i32
  }
}

</mosaic_0001>

<llo_original>
// kernel: tpu_custom_call.1
$region0: #{tpu_custom_call.1}
  #allocation0 [shape = 'u32[]', space=smem, size = 0x4, offset = 0x4, fixed_abs, tag = 'smem constant byte address 0x4 - core index']
  #allocation1 [shape = 'u32[144,128]{1,0:T(1,128)}', space=vmem, size = 0x12000, scoped, tag = 'internal scratch']
  #allocation2 [shape = 'f32[4,8]{1,0:T(4,128)}', space=vmem, size = 0x800, scoped, tag = 'scratch operand']
  %s0 = inlined_call_operand.vmem [shape: f32[4,16], index: 0, kind: input, shape index: {}]
  %s1 = inlined_call_operand.vmem [shape: f32[16,32], index: 1, kind: input, shape index: {}]
  %s2 = inlined_call_operand.vmem [shape: f32[1,32], index: 2, kind: input, shape index: {}]
  %s3 = inlined_call_operand.vmem [shape: f32[32,8], index: 3, kind: input, shape index: {}]
  %s4 = inlined_call_operand.vmem [shape: f32[1,8], index: 4, kind: input, shape index: {}]
  %s5 = inlined_call_operand.hbm [shape: f32[4,8], index: 5, kind: output, shape index: {}]
  %s6 = sld [smem:[#allocation0]]
  $region38: #{tpu_custom_call.1} parent=0
    _
  %s8 = ssub.s32 1, %s6
  %s9 = scalar_select 0, %s8, %s6
  $region1: #{tpu_custom_call.1} parent=0
    #allocation3 [shape = 'u8[2048]{0}', space=vmem, size = 0x800, scoped, tag = 'output window, operand 0, single buffered']
    #allocation4 [shape = 's32[1]{0}', space=sflag, size = 0x4, scoped, tag = 'scoped memory for tpu_custom_call.1']
    %10 = vsyncpa [#allocation4], 0
    // Predicated region
    $region2: #{tpu_custom_call.1} parent=1 // pred_check
      _
    $region3: #{tpu_custom_call.1} parent=1 // pred_check_branch
      %12 = sbr.rel (0) target = $region5
    $region4: #{tpu_custom_call.1} parent=1 // pred_region
      _
    $region5: #{tpu_custom_call.1} parent=1 // pred_fallthru
      _
    // Predicated region
    $region6: #{tpu_custom_call.1} parent=1 // pred_check
      _
    $region7: #{tpu_custom_call.1} parent=1 // pred_check_branch
      %14 = sbr.rel (0) target = $region9
    $region8: #{tpu_custom_call.1} parent=1 // pred_region
      _
    $region9: #{tpu_custom_call.1} parent=1 // pred_fallthru
      _
    // Predicated region
    $region10: #{tpu_custom_call.1} parent=1 // pred_check
      _
    $region11: #{tpu_custom_call.1} parent=1 // pred_check_branch
      %16 = sbr.rel (0) target = $region13
    $region12: #{tpu_custom_call.1} parent=1 // pred_region
      _
    $region13: #{tpu_custom_call.1} parent=1 // pred_fallthru
      _
    // Predicated region
    $region14: #{tpu_custom_call.1} parent=1 // pred_check
      _
    $region15: #{tpu_custom_call.1} parent=1 // pred_check_branch
      %18 = sbr.rel (0) target = $region17
    $region16: #{tpu_custom_call.1} parent=1 // pred_region
      _
    $region17: #{tpu_custom_call.1} parent=1 // pred_fallthru
      _
    // Predicated region
    $region18: #{tpu_custom_call.1} parent=1 // pred_check
      _
    $region19: #{tpu_custom_call.1} parent=1 // pred_check_branch
      %20 = sbr.rel (0) target = $region21
    $region20: #{tpu_custom_call.1} parent=1 // pred_region
      _
    $region21: #{tpu_custom_call.1} parent=1 // pred_fallthru
      _
    %p21 = scmp.eq.s32.totalorder 0, 0
    // Predicated region
    $region22: #{tpu_custom_call.1} parent=1 // pred_check
      %p22 = pneg %p21
    $region23: #{tpu_custom_call.1} parent=1 // pred_check_branch
      %24 = sbr.rel (%p22) target = $region25
    $region24: #{tpu_custom_call.1} parent=1 // pred_region
      %vm25 = vcmask 60416
      %26 = vst.msk [vmem:[#allocation2] sm:$0xf] %vm25, 0.0
    $region25: #{tpu_custom_call.1} parent=1 // pred_fallthru
      _
    %v27 = vld [vmem:[%s0] sm:$0xf]
    %v28 = vld [vmem:[%s1] sm:$0xff]
    %v29 = vld [vmem:[%s1 + $0x8] sm:$0xff]
    %v30 = vld [vmem:[%s2] sm:$0x1]
    %v32 = vlaneseq
    %v33 = vshrl.u32 %v32, 7
    %v34 = vsub.s32 0, %v33
    %v35 = vrot.slane %v30, %v34
    %vm37 = vcmask 130048
    %v39 = vsel %vm37, %v27, 0
    %41 = vmatprep.subr.mxu0 0.0
    %42 = vmatpush1.msra.mxu0 %v28
    %43 = vmatprep.subr.mxu0 0.0
    %44 = vmatpush1.msra.mxu0 %v29
    %45 = vmatprep.subr.mxu0 0.0
    %46 = vmatpush1.msra.mxu0 0.0
    %47 = vmatprep.subr.mxu0 0.0
    %48 = vmatpush1.msra.mxu0 0.0
    %49 = vmatprep.subr.mxu0 0.0
    %50 = vmatpush1.msra.mxu0 0.0
    %51 = vmatprep.subr.mxu0 0.0
    %52 = vmatpush1.msra.mxu0 0.0
    %53 = vmatprep.subr.mxu0 0.0
    %54 = vmatpush1.msra.mxu0 0.0
    %55 = vmatprep.subr.mxu0 0.0
    %56 = vmatpush1.msra.mxu0 0.0
    %57 = vmatprep.subr.mxu0 0.0
    %58 = vmatpush1.msra.mxu0 0.0
    %59 = vmatprep.subr.mxu0 0.0
    %60 = vmatpush1.msra.mxu0 0.0
    %61 = vmatprep.subr.mxu0 0.0
    %62 = vmatpush1.msra.mxu0 0.0
    %63 = vmatprep.subr.mxu0 0.0
    %64 = vmatpush1.msra.mxu0 0.0
    %65 = vmatprep.subr.mxu0 0.0
    %66 = vmatpush1.msra.mxu0 0.0
    %67 = vmatprep.subr.mxu0 0.0
    %68 = vmatpush1.msra.mxu0 0.0
    %69 = vmatprep.subr.mxu0 0.0
    %70 = vmatpush1.msra.mxu0 0.0
    %71 = vmatprep.subr.mxu0 0.0
    %72 = vmatpush1.msra.mxu0 0.0
    %73 = vmatprep.subr.mxu0 0.0
    %74 = vmatpush1.msra.mxu0 0.0
    %75 = vmatprep.subr.mxu0 0.0
    %76 = vmatpush1.msra.mxu0 0.0
    %77 = vmatprep.subr.mxu0 0.0
    %78 = vmatpush1.msra.mxu0 0.0
    %79 = vmatprep.subr.mxu0 0.0
    %80 = vmatpush1.msra.mxu0 0.0
    %81 = vmatprep.subr.mxu0 0.0
    %82 = vmatpush1.msra.mxu0 0.0
    %83 = vmatprep.subr.mxu0 0.0
    %84 = vmatpush1.msra.mxu0 0.0
    %85 = vmatprep.subr.mxu0 0.0
    %86 = vmatpush1.msra.mxu0 0.0
    %87 = vmatprep.subr.mxu0 0.0
    %88 = vmatpush1.msra.mxu0 0.0
    %89 = vmatprep.subr.mxu0 0.0
    %90 = vmatpush1.msra.mxu0 0.0
    %91 = vmatprep.subr.mxu0 0.0
    %92 = vmatpush1.msra.mxu0 0.0
    %93 = vmatprep.subr.mxu0 0.0
    %94 = vmatpush1.msra.mxu0 0.0
    %95 = vmatprep.subr.mxu0 0.0
    %96 = vmatpush1.msra.mxu0 0.0
    %97 = vmatprep.subr.mxu0 0.0
    %98 = vmatpush1.msra.mxu0 0.0
    %99 = vmatprep.subr.mxu0 0.0
    %100 = vmatpush1.msra.mxu0 0.0
    %101 = vmatprep.subr.mxu0 0.0
    %102 = vmatpush1.msra.mxu0 0.0
    %103 = vmatprep.subr.mxu0 0.0
    %104 = vmatpush1.msra.mxu0 0.0
    %105 = vmatprep.mubr.f32.mxu0 0.0
    %106 = vmatmul.mubr.f32.gmra.mrb[0].mxu0 %v39
    %v107 = vpop.f32.mrb[0].mxu0
    %v108 = vadd.f32 %v35, %v107
    %v109 = vpop.f32.mrb[0].mxu0
    %110 = vdwg.mxu0
    %v111 = vmax.f32 %v108, 0.0
    %v112 = vld [vmem:[#allocation2] sm:$0xf]
    %v113 = vld [vmem:[%s3] sm:$0xff]
    %v114 = vld [vmem:[%s3 + $0x8] sm:$0xff]
    %v115 = vld [vmem:[%s3 + $0x10] sm:$0xff]
    %v116 = vld [vmem:[%s3 + $0x18] sm:$0xff]
    %vm117 = vcmask 261120
    %v119 = vsel %vm117, %v111, 0
    %121 = vmatprep.subr.mxu0 0.0
    %122 = vmatpush1.msra.mxu0 %v113
    %123 = vmatprep.subr.mxu0 0.0
    %124 = vmatpush1.msra.mxu0 %v114
    %125 = vmatprep.subr.mxu0 0.0
    %126 = vmatpush1.msra.mxu0 %v115
    %127 = vmatprep.subr.mxu0 0.0
    %128 = vmatpush1.msra.mxu0 %v116
    %129 = vmatprep.subr.mxu0 0.0
    %130 = vmatpush1.msra.mxu0 0.0
    %131 = vmatprep.subr.mxu0 0.0
    %132 = vmatpush1.msra.mxu0 0.0
    %133 = vmatprep.subr.mxu0 0.0
    %134 = vmatpush1.msra.mxu0 0.0
    %135 = vmatprep.subr.mxu0 0.0
    %136 = vmatpush1.msra.mxu0 0.0
    %137 = vmatprep.subr.mxu0 0.0
    %138 = vmatpush1.msra.mxu0 0.0
    %139 = vmatprep.subr.mxu0 0.0
    %140 = vmatpush1.msra.mxu0 0.0
    %141 = vmatprep.subr.mxu0 0.0
    %142 = vmatpush1.msra.mxu0 0.0
    %143 = vmatprep.subr.mxu0 0.0
    %144 = vmatpush1.msra.mxu0 0.0
    %145 = vmatprep.subr.mxu0 0.0
    %146 = vmatpush1.msra.mxu0 0.0
    %147 = vmatprep.subr.mxu0 0.0
    %148 = vmatpush1.msra.mxu0 0.0
    %149 = vmatprep.subr.mxu0 0.0
    %150 = vmatpush1.msra.mxu0 0.0
    %151 = vmatprep.subr.mxu0 0.0
    %152 = vmatpush1.msra.mxu0 0.0
    %153 = vmatprep.subr.mxu0 0.0
    %154 = vmatpush1.msra.mxu0 0.0
    %155 = vmatprep.subr.mxu0 0.0
    %156 = vmatpush1.msra.mxu0 0.0
    %157 = vmatprep.subr.mxu0 0.0
    %158 = vmatpush1.msra.mxu0 0.0
    %159 = vmatprep.subr.mxu0 0.0
    %160 = vmatpush1.msra.mxu0 0.0
    %161 = vmatprep.subr.mxu0 0.0
    %162 = vmatpush1.msra.mxu0 0.0
    %163 = vmatprep.subr.mxu0 0.0
    %164 = vmatpush1.msra.mxu0 0.0
    %165 = vmatprep.subr.mxu0 0.0
    %166 = vmatpush1.msra.mxu0 0.0
    %167 = vmatprep.subr.mxu0 0.0
    %168 = vmatpush1.msra.mxu0 0.0
    %169 = vmatprep.subr.mxu0 0.0
    %170 = vmatpush1.msra.mxu0 0.0
    %171 = vmatprep.subr.mxu0 0.0
    %172 = vmatpush1.msra.mxu0 0.0
    %173 = vmatprep.subr.mxu0 0.0
    %174 = vmatpush1.msra.mxu0 0.0
    %175 = vmatprep.subr.mxu0 0.0
    %176 = vmatpush1.msra.mxu0 0.0
    %177 = vmatprep.subr.mxu0 0.0
    %178 = vmatpush1.msra.mxu0 0.0
    %179 = vmatprep.subr.mxu0 0.0
    %180 = vmatpush1.msra.mxu0 0.0
    %181 = vmatprep.subr.mxu0 0.0
    %182 = vmatpush1.msra.mxu0 0.0
    %183 = vmatprep.subr.mxu0 0.0
    %184 = vmatpush1.msra.mxu0 0.0
    %185 = vmatprep.mubr.f32.mxu0 0.0
    %186 = vmatmul.mubr.f32.gmra.mrb[0].mxu0 %v119
    %v187 = vpop.f32.mrb[0].mxu0
    %v188 = vadd.f32 0.0, %v187
    %v189 = vpop.f32.mrb[0].mxu0
    %190 = vdwg.mxu0
    %v191 = vadd.f32 %v112, %v188
    %vm192 = vcmask 60416
    %193 = vst.msk [vmem:[#allocation2] sm:$0xf] %vm192, %v191
    // Predicated region
    $region26: #{tpu_custom_call.1} parent=1 // pred_check
      %p194 = pneg %p21
    $region27: #{tpu_custom_call.1} parent=1 // pred_check_branch
      %196 = sbr.rel (%p194) target = $region29
    $region28: #{tpu_custom_call.1} parent=1 // pred_region
      %v197 = vld [vmem:[#allocation2] sm:$0xf]
      %v198 = vld [vmem:[%s4] sm:$0x1]
      %v200 = vlaneseq
      %v201 = vshrl.u32 %v200, 7
      %v202 = vsub.s32 0, %v201
      %v203 = vrot.slane %v198, %v202
      %v205 = vadd.f32 %v197, %v203
      %206 = vst.msk [vmem:[#allocation3] sm:$0xf] %vm192, %v205
    $region29: #{tpu_custom_call.1} parent=1 // pred_fallthru
      _
    // Predicated region
    $region30: #{tpu_custom_call.1} parent=1 // pred_check
      _
    $region31: #{tpu_custom_call.1} parent=1 // pred_check_branch
      %208 = sbr.rel (0) target = $region33
    $region32: #{tpu_custom_call.1} parent=1 // pred_region
      %s210 = ssub.s32 64, 64
      %211 = vsyncadd [#allocation4], %s210
      %s213 = sshll.u32 [#allocation3], 4
      %s214 = int_to_ptr.vmem [resolvable:$true] %s213
      %216 = dma.vmem_to_hbm [thread:$0]  %s214, 64, %s5, [#allocation4]
    $region33: #{tpu_custom_call.1} parent=1 // pred_fallthru
      _
    // Predicated region
    $region34: #{tpu_custom_call.1} parent=1 // pred_check
      _
    $region35: #{tpu_custom_call.1} parent=1 // pred_check_branch
      %218 = sbr.rel (0) target = $region37
    $region36: #{tpu_custom_call.1} parent=1 // pred_region
      %219 = dma.done [#allocation4], 64
    $region37: #{tpu_custom_call.1} parent=1 // pred_fallthru
      _
    %220 = vsyncpa [#allocation4], 1

</llo_original>
